<compile_context>
chip_gen: v7x
topology: tpu7x:2x2x1
jax: 0.10.0
libtpu: 0.0.40
codegen_flags: <defaults>
</compile_context>

<pallas_src>
import functools

import jax
import jax.numpy as jnp
from jax.experimental import pallas as pl
from jax.experimental.pallas import tpu as pltpu

LANE = 128
SUBLANE = 8


def _round_up(x, m):
    return (x + m - 1) // m * m


def _pad_to(arr, shape):
    pads = [(0, t - s) for s, t in zip(arr.shape, shape)]
    return jnp.pad(arr, pads)


# ----------------------------------------------------------------------------
# Fused Pallas kernel (all conv layers + pool + fc1 + log_softmax)
# ----------------------------------------------------------------------------
def _make_fused_kernel(layer_modes, c_pad, out_dim):
    """layer_modes: tuple of 'agg_first' (3 weight refs) / 'proj_first' (2 weight refs)."""

    def kernel(*refs):
        it = iter(refs)
        a_ref = next(it)          # [Np, Np]   bf16 adjacency (dst, src)
        x_ref = next(it)          # [Np, Cp]   f32 input features (zero-padded lanes)
        layer_refs = []
        for mode in layer_modes:
            k = 3 if mode == "agg_first" else 2
            layer_refs.append(tuple(next(it) for _ in range(k)))
        pool_ref = next(it)       # [G, Np]    mean-pool matrix
        fcw_ref = next(it)        # [Cp, Op]
        fcb_ref = next(it)        # [1, Op]
        o_ref = next(it)          # [G, Op]    output log-probs (padded lanes zero)
        x_scr = next(it)          # [Np, Cp]   f32 VMEM scratch: X between layers

        # A resident in VMEM for all layers; bf16 in HBM (exact integer multiplicities),
        # cast once to f32 so the math matches the f32 reference exactly.
        a = a_ref[...].astype(jnp.float32)
        x_scr[...] = x_ref[...]

        for mode, lrefs in zip(layer_modes, layer_refs):
            x = x_scr[...]
            if mode == "agg_first":
                # c_in < c_out: aggregate first, (A @ X) @ W_rel is the cheaper association.
                w_rel_ref, w_root_ref, b_ref = lrefs
                agg = jnp.dot(a, x, preferred_element_type=jnp.float32)
                out = jnp.dot(agg, w_rel_ref[...], preferred_element_type=jnp.float32)
                out = out + jnp.dot(x, w_root_ref[...], preferred_element_type=jnp.float32)
            else:
                # c_out <= c_in: one wide matmul X @ [W_rel | W_root], then A @ Y_rel.
                w_cat_ref, b_ref = lrefs
                y = jnp.dot(x, w_cat_ref[...], preferred_element_type=jnp.float32)
                out = jnp.dot(a, y[:, :c_pad], preferred_element_type=jnp.float32) + y[:, c_pad:]
            x_scr[...] = out + b_ref[...]

        # Head: global_mean_pool (P @ X) -> fc1 -> log_softmax over the valid lanes only.
        pooled = jnp.dot(pool_ref[...], x_scr[...], preferred_element_type=jnp.float32)
        logits = jnp.dot(pooled, fcw_ref[...], preferred_element_type=jnp.float32) + fcb_ref[...]
        lane = jax.lax.broadcasted_iota(jnp.int32, logits.shape, 1)
        valid = lane < out_dim
        masked = jnp.where(valid, logits, -1e30)
        m = jnp.max(masked, axis=-1, keepdims=True)
        shifted = masked - m
        sumexp = jnp.sum(jnp.where(valid, jnp.exp(shifted), 0.0), axis=-1, keepdims=True)
        lse = jnp.log(sumexp)
        o_ref[...] = jnp.where(valid, shifted - lse, 0.0)

    return kernel


# ----------------------------------------------------------------------------
# Model: params init, fused forward builder, pure-JAX reference
# ----------------------------------------------------------------------------
def init_params(key, input_features, output_channels, layers_num, model_dim,
                out_dim, hidden_sf=4, out_sf=2):
    hidden = hidden_sf * model_dim
    out_conv = out_sf * output_channels
    dims = [input_features] + [hidden] * (layers_num - 1) + [out_conv]

    params = {"convs": []}
    for i in range(layers_num):
        c_in, c_out = dims[i], dims[i + 1]
        key, k1, k2, k3 = jax.random.split(key, 4)
        scale = 1.0 / jnp.sqrt(jnp.float32(c_in))
        params["convs"].append({
            "w_rel": (jax.random.uniform(k1, (c_in, c_out), jnp.float32) * 2 - 1) * scale,
            "w_root": (jax.random.uniform(k2, (c_in, c_out), jnp.float32) * 2 - 1) * scale,
            "b": (jax.random.uniform(k3, (1, c_out), jnp.float32) * 2 - 1) * scale,
        })
    key, k1, k2 = jax.random.split(key, 3)
    scale = 1.0 / jnp.sqrt(jnp.float32(out_conv))
    params["fc1_w"] = (jax.random.uniform(k1, (out_conv, out_dim), jnp.float32) * 2 - 1) * scale
    params["fc1_b"] = (jax.random.uniform(k2, (1, out_dim), jnp.float32) * 2 - 1) * scale
    return params


def make_graph_conv_net(params, out_dim):
    """Build a forward(x, adj, pool) -> log-probs [G, out_dim] using one fused kernel."""
    convs = params["convs"]
    all_dims = [w["w_rel"].shape[0] for w in convs] + [w["w_rel"].shape[1] for w in convs]
    c_pad = _round_up(max(all_dims), LANE)          # lane-dense channel width
    out_pad = _round_up(out_dim, LANE)

    layer_modes = []
    flat_weights = []
    for w in convs:
        c_in, c_out = w["w_rel"].shape
        b_pad = _pad_to(w["b"], (1, c_pad))
        if c_out > c_in:
            layer_modes.append("agg_first")
            flat_weights += [_pad_to(w["w_rel"], (c_pad, c_pad)),
                             _pad_to(w["w_root"], (c_pad, c_pad)),
                             b_pad]
        else:
            layer_modes.append("proj_first")
            w_cat = jnp.concatenate([_pad_to(w["w_rel"], (c_pad, c_pad)),
                                     _pad_to(w["w_root"], (c_pad, c_pad))], axis=1)
            flat_weights += [w_cat, b_pad]
    fc_w = _pad_to(params["fc1_w"], (c_pad, out_pad))
    fc_b = _pad_to(params["fc1_b"], (1, out_pad))

    kernel = _make_fused_kernel(tuple(layer_modes), c_pad, out_dim)
    n_in = 2 + len(flat_weights) + 3

    def forward(x, adj, pool):
        n = x.shape[0]
        g = pool.shape[0]
        n_pad = _round_up(n, SUBLANE)
        x_p = _pad_to(x.astype(jnp.float32), (n_pad, c_pad))
        adj_p = _pad_to(adj, (n_pad, n_pad)).astype(jnp.bfloat16)   # exact: integer multiplicities
        pool_p = _pad_to(pool.astype(jnp.float32), (g, n_pad))

        out = pl.pallas_call(
            kernel,
            out_shape=jax.ShapeDtypeStruct((g, out_pad), jnp.float32),
            in_specs=[pl.BlockSpec(memory_space=pltpu.MemorySpace.VMEM)] * n_in,
            out_specs=pl.BlockSpec(memory_space=pltpu.MemorySpace.VMEM),
            scratch_shapes=[pltpu.VMEM((n_pad, c_pad), jnp.float32)],
            compiler_params=pltpu.CompilerParams(vmem_limit_bytes=32 * 1024 * 1024),
        )(adj_p, x_p, *flat_weights, pool_p, fc_w, fc_b)
        return out[:, :out_dim]

    return forward


def reference_forward(params, x, adj, pool):
    for layer in params["convs"]:
        x = (adj @ x) @ layer["w_rel"] + x @ layer["w_root"] + layer["b"]
    pooled = pool @ x
    logits = pooled @ params["fc1_w"] + params["fc1_b"]
    return jax.nn.log_softmax(logits, axis=1)


# ----------------------------------------------------------------------------
# Main
# ----------------------------------------------------------------------------
if __name__ == "__main__":
    # Small, deterministic problem.
    N = 16                 # total nodes across the batch of graphs
    G = 2                  # number of graphs in the batch
    input_features = 4
    output_channels = 4
    layers_num = 3
    model_dim = 8          # hidden = 4 * 8 = 32 ; conv out = 2 * 4 = 8
    out_dim = 6
    num_edges = 40

    key = jax.random.PRNGKey(0)
    key, kx, ks, kd = jax.random.split(key, 4)

    # Node features.
    x = jax.random.normal(kx, (N, input_features), jnp.float32)

    # Random edge_index [2, E] (src row 0, dst row 1), like PyG.
    src = jax.random.randint(ks, (num_edges,), 0, N)
    dst = jax.random.randint(kd, (num_edges,), 0, N)

    # Dense adjacency A[dst, src] (+= handles duplicate edges like 'add' aggregation).
    adj = jnp.zeros((N, N), jnp.float32).at[dst, src].add(1.0)

    # Batch vector: first half of nodes -> graph 0, second half -> graph 1.
    batch = jnp.concatenate([jnp.zeros(N // 2, jnp.int32), jnp.ones(N - N // 2, jnp.int32)])
    one_hot = (batch[None, :] == jnp.arange(G)[:, None]).astype(jnp.float32)   # [G, N]
    counts = jnp.maximum(one_hot.sum(axis=1, keepdims=True), 1.0)
    pool = one_hot / counts                                                     # mean-pool matrix

    params = init_params(key, input_features, output_channels, layers_num,
                         model_dim, out_dim)

    forward = jax.jit(make_graph_conv_net(params, out_dim))
    out = jax.block_until_ready(forward(x, adj, pool))

    ref = reference_forward(params, x, adj, pool)
    assert out.shape == (G, out_dim)
    assert jnp.allclose(out, ref, atol=1e-4, rtol=1e-4), "Pallas output mismatch vs reference"

    print("KERNEL_OK")
</pallas_src>

<mosaic_0001>
module attributes {stable_mosaic.version = 11 : i64} {
  func.func @kernel(%arg0: memref<16x16xbf16, #tpu.memory_space<vmem>>, %arg1: memref<16x128xf32, #tpu.memory_space<vmem>>, %arg2: memref<128x128xf32, #tpu.memory_space<vmem>>, %arg3: memref<128x128xf32, #tpu.memory_space<vmem>>, %arg4: memref<1x128xf32, #tpu.memory_space<vmem>>, %arg5: memref<128x256xf32, #tpu.memory_space<vmem>>, %arg6: memref<1x128xf32, #tpu.memory_space<vmem>>, %arg7: memref<128x256xf32, #tpu.memory_space<vmem>>, %arg8: memref<1x128xf32, #tpu.memory_space<vmem>>, %arg9: memref<2x16xf32, #tpu.memory_space<vmem>>, %arg10: memref<128x128xf32, #tpu.memory_space<vmem>>, %arg11: memref<1x128xf32, #tpu.memory_space<vmem>>, %arg12: memref<2x128xf32, #tpu.memory_space<vmem>>, %arg13: memref<16x128xf32, #tpu.memory_space<vmem>>) attributes {dimension_semantics = [], scalar_prefetch = 0 : i64, scratch_operands = 1 : i64, tpu.core_type = #tpu.core_type<tc>} {
    %c0 = arith.constant 0 : index
    %c0_0 = arith.constant 0 : index
    %0 = vector.load %arg0[%c0, %c0_0] : memref<16x16xbf16, #tpu.memory_space<vmem>>, vector<16x16xbf16>
    %1 = arith.extf %0 : vector<16x16xbf16> to vector<16x16xf32>
    %c0_1 = arith.constant 0 : index
    %c0_2 = arith.constant 0 : index
    %2 = vector.load %arg1[%c0_1, %c0_2] : memref<16x128xf32, #tpu.memory_space<vmem>>, vector<16x128xf32>
    %c0_3 = arith.constant 0 : index
    %c0_4 = arith.constant 0 : index
    %3 = vector.load %arg13[%c0_3, %c0_4] : memref<16x128xf32, #tpu.memory_space<vmem>>, vector<16x128xf32>
    tpu.vector_store %arg13[%c0_3, %c0_4], %2 {strides = array<i32>} : memref<16x128xf32, #tpu.memory_space<vmem>>, vector<16x128xf32>,
    %c0_5 = arith.constant 0 : index
    %c0_6 = arith.constant 0 : index
    %4 = vector.load %arg13[%c0_5, %c0_6] : memref<16x128xf32, #tpu.memory_space<vmem>>, vector<16x128xf32>
    %cst = arith.constant dense<0.000000e+00> : vector<16x128xf32>
    %5 = tpu.matmul %1, %4, %cst {dimension_numbers = #tpu.dot_dimension_numbers<[1], [0], [0], [1], [0, 0, 1, 1], [], []>} : vector<16x16xf32>, vector<16x128xf32>, vector<16x128xf32> -> vector<16x128xf32>
    %c0_7 = arith.constant 0 : index
    %c0_8 = arith.constant 0 : index
    %6 = vector.load %arg2[%c0_7, %c0_8] : memref<128x128xf32, #tpu.memory_space<vmem>>, vector<128x128xf32>
    %cst_9 = arith.constant dense<0.000000e+00> : vector<16x128xf32>
    %7 = tpu.matmul %5, %6, %cst_9 {dimension_numbers = #tpu.dot_dimension_numbers<[1], [0], [0], [1], [0, 0, 1, 1], [], []>} : vector<16x128xf32>, vector<128x128xf32>, vector<16x128xf32> -> vector<16x128xf32>
    %c0_10 = arith.constant 0 : index
    %c0_11 = arith.constant 0 : index
    %8 = vector.load %arg3[%c0_10, %c0_11] : memref<128x128xf32, #tpu.memory_space<vmem>>, vector<128x128xf32>
    %cst_12 = arith.constant dense<0.000000e+00> : vector<16x128xf32>
    %9 = tpu.matmul %4, %8, %cst_12 {dimension_numbers = #tpu.dot_dimension_numbers<[1], [0], [0], [1], [0, 0, 1, 1], [], []>} : vector<16x128xf32>, vector<128x128xf32>, vector<16x128xf32> -> vector<16x128xf32>
    %10 = arith.addf %7, %9 : vector<16x128xf32>
    %c0_13 = arith.constant 0 : index
    %c0_14 = arith.constant 0 : index
    %11 = vector.load %arg4[%c0_13, %c0_14] : memref<1x128xf32, #tpu.memory_space<vmem>>, vector<1x128xf32>
    %12 = vector.broadcast %11 : vector<1x128xf32> to vector<16x128xf32>
    %13 = arith.addf %10, %12 : vector<16x128xf32>
    %c0_15 = arith.constant 0 : index
    %c0_16 = arith.constant 0 : index
    %14 = vector.load %arg13[%c0_15, %c0_16] : memref<16x128xf32, #tpu.memory_space<vmem>>, vector<16x128xf32>
    tpu.vector_store %arg13[%c0_15, %c0_16], %13 {strides = array<i32>} : memref<16x128xf32, #tpu.memory_space<vmem>>, vector<16x128xf32>,
    %c0_17 = arith.constant 0 : index
    %c0_18 = arith.constant 0 : index
    %15 = vector.load %arg13[%c0_17, %c0_18] : memref<16x128xf32, #tpu.memory_space<vmem>>, vector<16x128xf32>
    %c0_19 = arith.constant 0 : index
    %c0_20 = arith.constant 0 : index
    %16 = vector.load %arg5[%c0_19, %c0_20] : memref<128x256xf32, #tpu.memory_space<vmem>>, vector<128x256xf32>
    %cst_21 = arith.constant dense<0.000000e+00> : vector<16x256xf32>
    %17 = tpu.matmul %15, %16, %cst_21 {dimension_numbers = #tpu.dot_dimension_numbers<[1], [0], [0], [1], [0, 0, 1, 1], [], []>} : vector<16x128xf32>, vector<128x256xf32>, vector<16x256xf32> -> vector<16x256xf32>
    %18 = vector.extract_strided_slice %17 {offsets = [0, 0], sizes = [16, 128], strides = [1, 1]} : vector<16x256xf32> to vector<16x128xf32>
    %cst_22 = arith.constant dense<0.000000e+00> : vector<16x128xf32>
    %19 = tpu.matmul %1, %18, %cst_22 {dimension_numbers = #tpu.dot_dimension_numbers<[1], [0], [0], [1], [0, 0, 1, 1], [], []>} : vector<16x16xf32>, vector<16x128xf32>, vector<16x128xf32> -> vector<16x128xf32>
    %20 = vector.extract_strided_slice %17 {offsets = [0, 128], sizes = [16, 128], strides = [1, 1]} : vector<16x256xf32> to vector<16x128xf32>
    %21 = arith.addf %19, %20 : vector<16x128xf32>
    %c0_23 = arith.constant 0 : index
    %c0_24 = arith.constant 0 : index
    %22 = vector.load %arg6[%c0_23, %c0_24] : memref<1x128xf32, #tpu.memory_space<vmem>>, vector<1x128xf32>
    %23 = vector.broadcast %22 : vector<1x128xf32> to vector<16x128xf32>
    %24 = arith.addf %21, %23 : vector<16x128xf32>
    %c0_25 = arith.constant 0 : index
    %c0_26 = arith.constant 0 : index
    %25 = vector.load %arg13[%c0_25, %c0_26] : memref<16x128xf32, #tpu.memory_space<vmem>>, vector<16x128xf32>
    tpu.vector_store %arg13[%c0_25, %c0_26], %24 {strides = array<i32>} : memref<16x128xf32, #tpu.memory_space<vmem>>, vector<16x128xf32>,
    %c0_27 = arith.constant 0 : index
    %c0_28 = arith.constant 0 : index
    %26 = vector.load %arg13[%c0_27, %c0_28] : memref<16x128xf32, #tpu.memory_space<vmem>>, vector<16x128xf32>
    %c0_29 = arith.constant 0 : index
    %c0_30 = arith.constant 0 : index
    %27 = vector.load %arg7[%c0_29, %c0_30] : memref<128x256xf32, #tpu.memory_space<vmem>>, vector<128x256xf32>
    %cst_31 = arith.constant dense<0.000000e+00> : vector<16x256xf32>
    %28 = tpu.matmul %26, %27, %cst_31 {dimension_numbers = #tpu.dot_dimension_numbers<[1], [0], [0], [1], [0, 0, 1, 1], [], []>} : vector<16x128xf32>, vector<128x256xf32>, vector<16x256xf32> -> vector<16x256xf32>
    %29 = vector.extract_strided_slice %28 {offsets = [0, 0], sizes = [16, 128], strides = [1, 1]} : vector<16x256xf32> to vector<16x128xf32>
    %cst_32 = arith.constant dense<0.000000e+00> : vector<16x128xf32>
    %30 = tpu.matmul %1, %29, %cst_32 {dimension_numbers = #tpu.dot_dimension_numbers<[1], [0], [0], [1], [0, 0, 1, 1], [], []>} : vector<16x16xf32>, vector<16x128xf32>, vector<16x128xf32> -> vector<16x128xf32>
    %31 = vector.extract_strided_slice %28 {offsets = [0, 128], sizes = [16, 128], strides = [1, 1]} : vector<16x256xf32> to vector<16x128xf32>
    %32 = arith.addf %30, %31 : vector<16x128xf32>
    %c0_33 = arith.constant 0 : index
    %c0_34 = arith.constant 0 : index
    %33 = vector.load %arg8[%c0_33, %c0_34] : memref<1x128xf32, #tpu.memory_space<vmem>>, vector<1x128xf32>
    %34 = vector.broadcast %33 : vector<1x128xf32> to vector<16x128xf32>
    %35 = arith.addf %32, %34 : vector<16x128xf32>
    %c0_35 = arith.constant 0 : index
    %c0_36 = arith.constant 0 : index
    %36 = vector.load %arg13[%c0_35, %c0_36] : memref<16x128xf32, #tpu.memory_space<vmem>>, vector<16x128xf32>
    tpu.vector_store %arg13[%c0_35, %c0_36], %35 {strides = array<i32>} : memref<16x128xf32, #tpu.memory_space<vmem>>, vector<16x128xf32>,
    %c0_37 = arith.constant 0 : index
    %c0_38 = arith.constant 0 : index
    %37 = vector.load %arg9[%c0_37, %c0_38] : memref<2x16xf32, #tpu.memory_space<vmem>>, vector<2x16xf32>
    %c0_39 = arith.constant 0 : index
    %c0_40 = arith.constant 0 : index
    %38 = vector.load %arg13[%c0_39, %c0_40] : memref<16x128xf32, #tpu.memory_space<vmem>>, vector<16x128xf32>
    %cst_41 = arith.constant dense<0.000000e+00> : vector<2x128xf32>
    %39 = tpu.matmul %37, %38, %cst_41 {dimension_numbers = #tpu.dot_dimension_numbers<[1], [0], [0], [1], [0, 0, 1, 1], [], []>} : vector<2x16xf32>, vector<16x128xf32>, vector<2x128xf32> -> vector<2x128xf32>
    %c0_42 = arith.constant 0 : index
    %c0_43 = arith.constant 0 : index
    %40 = vector.load %arg10[%c0_42, %c0_43] : memref<128x128xf32, #tpu.memory_space<vmem>>, vector<128x128xf32>
    %cst_44 = arith.constant dense<0.000000e+00> : vector<2x128xf32>
    %41 = tpu.matmul %39, %40, %cst_44 {dimension_numbers = #tpu.dot_dimension_numbers<[1], [0], [0], [1], [0, 0, 1, 1], [], []>} : vector<2x128xf32>, vector<128x128xf32>, vector<2x128xf32> -> vector<2x128xf32>
    %c0_45 = arith.constant 0 : index
    %c0_46 = arith.constant 0 : index
    %42 = vector.load %arg11[%c0_45, %c0_46] : memref<1x128xf32, #tpu.memory_space<vmem>>, vector<1x128xf32>
    %43 = vector.broadcast %42 : vector<1x128xf32> to vector<2x128xf32>
    %44 = arith.addf %41, %43 : vector<2x128xf32>
    %45 = tpu.iota {dimensions = array<i32: 1>} : vector<2x128xi32>
    %c6_i32 = arith.constant 6 : i32
    %46 = vector.broadcast %c6_i32 : i32 to vector<2x128xi32>
    %47 = arith.cmpi slt, %45, %46 : vector<2x128xi32>
    %cst_47 = arith.constant -1.000000e+30 : f32
    %48 = vector.broadcast %cst_47 : f32 to vector<2x128xf32>
    %49 = arith.select %47, %44, %48 : vector<2x128xi1>, vector<2x128xf32>
    %cst_48 = arith.constant dense<0xFF800000> : vector<2xf32>
    %50 = vector.multi_reduction <maximumf>, %49, %cst_48 [1] : vector<2x128xf32> to vector<2xf32>
    %51 = vector.shape_cast %50 : vector<2xf32> to vector<2x1xf32>
    %52 = vector.broadcast %51 : vector<2x1xf32> to vector<2x128xf32>
    %53 = arith.subf %49, %52 : vector<2x128xf32>
    %54 = math.exp %53 : vector<2x128xf32>
    %cst_49 = arith.constant 0.000000e+00 : f32
    %55 = vector.broadcast %cst_49 : f32 to vector<2x128xf32>
    %56 = arith.select %47, %54, %55 : vector<2x128xi1>, vector<2x128xf32>
    %cst_50 = arith.constant dense<0.000000e+00> : vector<2xf32>
    %57 = vector.multi_reduction <add>, %56, %cst_50 [1] : vector<2x128xf32> to vector<2xf32>
    %58 = vector.shape_cast %57 : vector<2xf32> to vector<2x1xf32>
    %59 = math.log %58 : vector<2x1xf32>
    %60 = vector.broadcast %59 : vector<2x1xf32> to vector<2x128xf32>
    %61 = arith.subf %53, %60 : vector<2x128xf32>
    %cst_51 = arith.constant 0.000000e+00 : f32
    %62 = vector.broadcast %cst_51 : f32 to vector<2x128xf32>
    %63 = arith.select %47, %61, %62 : vector<2x128xi1>, vector<2x128xf32>
    %c0_52 = arith.constant 0 : index
    %c0_53 = arith.constant 0 : index
    %64 = vector.load %arg12[%c0_52, %c0_53] : memref<2x128xf32, #tpu.memory_space<vmem>>, vector<2x128xf32>
    tpu.vector_store %arg12[%c0_52, %c0_53], %63 {strides = array<i32>} : memref<2x128xf32, #tpu.memory_space<vmem>>, vector<2x128xf32>,
    return
  }
}

</mosaic_0001>

<llo_original>
// kernel: forward.1
$region0: #{forward.1}
  #allocation0 [shape = 'u32[]', space=smem, size = 0x4, offset = 0x4, fixed_abs, tag = 'smem constant byte address 0x4 - core index']
  #allocation1 [shape = 'u32[144,128]{1,0:T(1,128)}', space=vmem, size = 0x12000, scoped, tag = 'internal scratch']
  #allocation2 [shape = 'f32[16,128]{1,0:T(8,128)}', space=vmem, size = 0x2000, scoped, tag = 'scratch operand']
  %s0 = inlined_call_operand.vmem [shape: bf16[16,16], index: 0, kind: input, shape index: {}]
  %s1 = inlined_call_operand.vmem [shape: f32[16,128], index: 1, kind: input, shape index: {}]
  %s2 = inlined_call_operand.hbm [shape: f32[128,128], index: 2, kind: input, shape index: {}]
  %s3 = inlined_call_operand.hbm [shape: f32[128,128], index: 3, kind: input, shape index: {}]
  %s4 = inlined_call_operand.vmem [shape: f32[1,128], index: 4, kind: input, shape index: {}]
  %s5 = inlined_call_operand.hbm [shape: f32[128,256], index: 5, kind: input, shape index: {}]
  %s6 = inlined_call_operand.vmem [shape: f32[1,128], index: 6, kind: input, shape index: {}]
  %s7 = inlined_call_operand.hbm [shape: f32[128,256], index: 7, kind: input, shape index: {}]
  %s8 = inlined_call_operand.vmem [shape: f32[1,128], index: 8, kind: input, shape index: {}]
  %s9 = inlined_call_operand.vmem [shape: f32[2,16], index: 9, kind: input, shape index: {}]
  %s10 = inlined_call_operand.hbm [shape: f32[128,128], index: 10, kind: input, shape index: {}]
  %s11 = inlined_call_operand.vmem [shape: f32[1,128], index: 11, kind: input, shape index: {}]
  %s12 = inlined_call_operand.hbm [shape: f32[2,128], index: 12, kind: output, shape index: {}]
  %s13 = sld [smem:[#allocation0]]
  $region78: #{forward.1} parent=0
    _
  %s15 = ssub.s32 1, %s13
  %s16 = scalar_select 0, %s15, %s13
  $region1: #{forward.1} parent=0
    #allocation3 [shape = 'u8[65536]{0}', space=vmem, size = 0x10000, scoped, tag = 'input window, operand 2, single buffered']
    #allocation4 [shape = 's32[1]{0}', space=sflag, size = 0x4, scoped, tag = 'scoped memory for forward.1']
    #allocation5 [shape = 's32[1]{0}', space=sflag, size = 0x4, scoped, tag = 'scoped memory for forward.1']
    #allocation6 [shape = 'u8[65536]{0}', space=vmem, size = 0x10000, scoped, tag = 'input window, operand 3, single buffered']
    #allocation7 [shape = 's32[1]{0}', space=sflag, size = 0x4, scoped, tag = 'scoped memory for forward.1']
    #allocation8 [shape = 'u8[131072]{0}', space=vmem, size = 0x20000, scoped, tag = 'input window, operand 5, single buffered']
    #allocation9 [shape = 'u8[131072]{0}', space=vmem, size = 0x20000, scoped, tag = 'input window, operand 7, single buffered']
    #allocation10 [shape = 's32[1]{0}', space=sflag, size = 0x4, scoped, tag = 'scoped memory for forward.1']
    #allocation11 [shape = 'u8[65536]{0}', space=vmem, size = 0x10000, scoped, tag = 'input window, operand 10, single buffered']
    #allocation12 [shape = 'u8[1024]{0}', space=vmem, size = 0x400, scoped, tag = 'output window, operand 0, single buffered']
    %17 = vsyncpa [#allocation4], 0
    %18 = vsyncpa [#allocation7], 0
    %19 = vsyncpa [#allocation10], 0
    %20 = vsyncpa [#allocation5], 0
    // Predicated region
    $region2: #{forward.1} parent=1 // pred_check
      _
    $region3: #{forward.1} parent=1 // pred_check_branch
      %22 = sbr.rel (0) target = $region5
    $region4: #{forward.1} parent=1 // pred_region
      _
    $region5: #{forward.1} parent=1 // pred_fallthru
      _
    // Predicated region
    $region6: #{forward.1} parent=1 // pred_check
      _
    $region7: #{forward.1} parent=1 // pred_check_branch
      %24 = sbr.rel (0) target = $region9
    $region8: #{forward.1} parent=1 // pred_region
      _
    $region9: #{forward.1} parent=1 // pred_fallthru
      _
    // Predicated region
    $region10: #{forward.1} parent=1 // pred_check
      _
    $region11: #{forward.1} parent=1 // pred_check_branch
      %26 = sbr.rel (0) target = $region13
    $region12: #{forward.1} parent=1 // pred_region
      %s28 = ssub.s32 2048, 2048
      %29 = vsyncadd [#allocation4], %s28
      %s30 = sshll.u32 [#allocation3], 4
      %s31 = int_to_ptr.vmem [resolvable:$true] %s30
      %36 = dma.hbm_to_vmem [thread:$0]  %s2, 2048, %s31, [#allocation4], 128, 128, 8
    $region13: #{forward.1} parent=1 // pred_fallthru
      _
    // Predicated region
    $region14: #{forward.1} parent=1 // pred_check
      _
    $region15: #{forward.1} parent=1 // pred_check_branch
      %38 = sbr.rel (0) target = $region17
    $region16: #{forward.1} parent=1 // pred_region
      %s40 = ssub.s32 2048, 2048
      %41 = vsyncadd [#allocation7], %s40
      %s42 = sshll.u32 [#allocation6], 4
      %s43 = int_to_ptr.vmem [resolvable:$true] %s42
      %48 = dma.hbm_to_vmem [thread:$0]  %s3, 2048, %s43, [#allocation7], 128, 128, 8
    $region17: #{forward.1} parent=1 // pred_fallthru
      _
    // Predicated region
    $region18: #{forward.1} parent=1 // pred_check
      _
    $region19: #{forward.1} parent=1 // pred_check_branch
      %50 = sbr.rel (0) target = $region21
    $region20: #{forward.1} parent=1 // pred_region
      _
    $region21: #{forward.1} parent=1 // pred_fallthru
      _
    // Predicated region
    $region22: #{forward.1} parent=1 // pred_check
      _
    $region23: #{forward.1} parent=1 // pred_check_branch
      %52 = sbr.rel (0) target = $region25
    $region24: #{forward.1} parent=1 // pred_region
      %s54 = ssub.s32 4096, 4096
      %55 = vsyncadd [#allocation7], %s54
      %s56 = sshll.u32 [#allocation8], 4
      %s57 = int_to_ptr.vmem [resolvable:$true] %s56
      %62 = dma.hbm_to_vmem [thread:$0]  %s5, 4096, %s57, [#allocation7], 256, 256, 16
    $region25: #{forward.1} parent=1 // pred_fallthru
      _
    // Predicated region
    $region26: #{forward.1} parent=1 // pred_check
      _
    $region27: #{forward.1} parent=1 // pred_check_branch
      %64 = sbr.rel (0) target = $region29
    $region28: #{forward.1} parent=1 // pred_region
      _
    $region29: #{forward.1} parent=1 // pred_fallthru
      _
    // Predicated region
    $region30: #{forward.1} parent=1 // pred_check
      _
    $region31: #{forward.1} parent=1 // pred_check_branch
      %66 = sbr.rel (0) target = $region33
    $region32: #{forward.1} parent=1 // pred_region
      %s68 = ssub.s32 4096, 4096
      %69 = vsyncadd [#allocation10], %s68
      %s70 = sshll.u32 [#allocation9], 4
      %s71 = int_to_ptr.vmem [resolvable:$true] %s70
      %76 = dma.hbm_to_vmem [thread:$0]  %s7, 4096, %s71, [#allocation10], 256, 256, 16
    $region33: #{forward.1} parent=1 // pred_fallthru
      _
    // Predicated region
    $region34: #{forward.1} parent=1 // pred_check
      _
    $region35: #{forward.1} parent=1 // pred_check_branch
      %78 = sbr.rel (0) target = $region37
    $region36: #{forward.1} parent=1 // pred_region
      _
    $region37: #{forward.1} parent=1 // pred_fallthru
      _
    // Predicated region
    $region38: #{forward.1} parent=1 // pred_check
      _
    $region39: #{forward.1} parent=1 // pred_check_branch
      %80 = sbr.rel (0) target = $region41
    $region40: #{forward.1} parent=1 // pred_region
      _
    $region41: #{forward.1} parent=1 // pred_fallthru
      _
    // Predicated region
    $region42: #{forward.1} parent=1 // pred_check
      _
    $region43: #{forward.1} parent=1 // pred_check_branch
      %82 = sbr.rel (0) target = $region45
    $region44: #{forward.1} parent=1 // pred_region
      %s84 = ssub.s32 2048, 2048
      %85 = vsyncadd [#allocation10], %s84
      %s86 = sshll.u32 [#allocation11], 4
      %s87 = int_to_ptr.vmem [resolvable:$true] %s86
      %92 = dma.hbm_to_vmem [thread:$0]  %s10, 2048, %s87, [#allocation10], 128, 128, 8
    $region45: #{forward.1} parent=1 // pred_fallthru
      _
    // Predicated region
    $region46: #{forward.1} parent=1 // pred_check
      _
    $region47: #{forward.1} parent=1 // pred_check_branch
      %94 = sbr.rel (0) target = $region49
    $region48: #{forward.1} parent=1 // pred_region
      _
    $region49: #{forward.1} parent=1 // pred_fallthru
      _
    // Predicated region
    $region50: #{forward.1} parent=1 // pred_check
      _
    $region51: #{forward.1} parent=1 // pred_check_branch
      %96 = sbr.rel (0) target = $region53
    $region52: #{forward.1} parent=1 // pred_region
      %97 = dma.done [#allocation4], 2048
    $region53: #{forward.1} parent=1 // pred_fallthru
      _
    // Predicated region
    $region54: #{forward.1} parent=1 // pred_check
      _
    $region55: #{forward.1} parent=1 // pred_check_branch
      %99 = sbr.rel (0) target = $region57
    $region56: #{forward.1} parent=1 // pred_region
      %100 = dma.done [#allocation7], 2048
    $region57: #{forward.1} parent=1 // pred_fallthru
      _
    // Predicated region
    $region58: #{forward.1} parent=1 // pred_check
      _
    $region59: #{forward.1} parent=1 // pred_check_branch
      %102 = sbr.rel (0) target = $region61
    $region60: #{forward.1} parent=1 // pred_region
      %103 = dma.done [#allocation7], 4096
    $region61: #{forward.1} parent=1 // pred_fallthru
      _
    // Predicated region
    $region62: #{forward.1} parent=1 // pred_check
      _
    $region63: #{forward.1} parent=1 // pred_check_branch
      %105 = sbr.rel (0) target = $region65
    $region64: #{forward.1} parent=1 // pred_region
      %106 = dma.done [#allocation10], 4096
    $region65: #{forward.1} parent=1 // pred_fallthru
      _
    // Predicated region
    $region66: #{forward.1} parent=1 // pred_check
      _
    $region67: #{forward.1} parent=1 // pred_check_branch
      %108 = sbr.rel (0) target = $region69
    $region68: #{forward.1} parent=1 // pred_region
      %109 = dma.done [#allocation10], 2048
    $region69: #{forward.1} parent=1 // pred_fallthru
      _
    %v110 = vld [vmem:[%s0] sm:$0xf]
    %v111 = vld [vmem:[%s0 + $0x4] sm:$0xf]
    %v112 = vunpack.c.l.bf16 %v110
    %v113 = vunpack.c.l.bf16 %v111
    %v114 = vld [vmem:[%s1] sm:$0xff]
    %v115 = vld [vmem:[%s1 + $0x8] sm:$0xff]
    %116 = vst [vmem:[#allocation2] sm:$0xff] %v114
    %117 = vst [vmem:[#allocation2 + $0x8] sm:$0xff] %v115
    %v118 = vld [vmem:[#allocation2] sm:$0xff]
    %v119 = vld [vmem:[#allocation2 + $0x8] sm:$0xff]
    %vm120 = vcmask 130048
    %v122 = vsel %vm120, %v112, 0
    %v125 = vsel %vm120, %v113, 0
    %127 = vmatprep.subr.mxu0 0.0
    %128 = vmatpush1.msra.mxu0 %v118
    %129 = vmatprep.subr.mxu0 0.0
    %130 = vmatpush1.msra.mxu0 %v119
    %131 = vmatprep.subr.mxu0 0.0
    %132 = vmatpush1.msra.mxu0 0.0
    %133 = vmatprep.subr.mxu0 0.0
    %134 = vmatpush1.msra.mxu0 0.0
    %135 = vmatprep.subr.mxu0 0.0
    %136 = vmatpush1.msra.mxu0 0.0
    %137 = vmatprep.subr.mxu0 0.0
    %138 = vmatpush1.msra.mxu0 0.0
    %139 = vmatprep.subr.mxu0 0.0
    %140 = vmatpush1.msra.mxu0 0.0
    %141 = vmatprep.subr.mxu0 0.0
    %142 = vmatpush1.msra.mxu0 0.0
    %143 = vmatprep.subr.mxu0 0.0
    %144 = vmatpush1.msra.mxu0 0.0
    %145 = vmatprep.subr.mxu0 0.0
    %146 = vmatpush1.msra.mxu0 0.0
    %147 = vmatprep.subr.mxu0 0.0
    %148 = vmatpush1.msra.mxu0 0.0
    %149 = vmatprep.subr.mxu0 0.0
    %150 = vmatpush1.msra.mxu0 0.0
    %151 = vmatprep.subr.mxu0 0.0
    %152 = vmatpush1.msra.mxu0 0.0
    %153 = vmatprep.subr.mxu0 0.0
    %154 = vmatpush1.msra.mxu0 0.0
    %155 = vmatprep.subr.mxu0 0.0
    %156 = vmatpush1.msra.mxu0 0.0
    %157 = vmatprep.subr.mxu0 0.0
    %158 = vmatpush1.msra.mxu0 0.0
    %159 = vmatprep.subr.mxu0 0.0
    %160 = vmatpush1.msra.mxu0 0.0
    %161 = vmatprep.subr.mxu0 0.0
    %162 = vmatpush1.msra.mxu0 0.0
    %163 = vmatprep.subr.mxu0 0.0
    %164 = vmatpush1.msra.mxu0 0.0
    %165 = vmatprep.subr.mxu0 0.0
    %166 = vmatpush1.msra.mxu0 0.0
    %167 = vmatprep.subr.mxu0 0.0
    %168 = vmatpush1.msra.mxu0 0.0
    %169 = vmatprep.subr.mxu0 0.0
    %170 = vmatpush1.msra.mxu0 0.0
    %171 = vmatprep.subr.mxu0 0.0
    %172 = vmatpush1.msra.mxu0 0.0
    %173 = vmatprep.subr.mxu0 0.0
    %174 = vmatpush1.msra.mxu0 0.0
    %175 = vmatprep.subr.mxu0 0.0
    %176 = vmatpush1.msra.mxu0 0.0
    %177 = vmatprep.subr.mxu0 0.0
    %178 = vmatpush1.msra.mxu0 0.0
    %179 = vmatprep.subr.mxu0 0.0
    %180 = vmatpush1.msra.mxu0 0.0
    %181 = vmatprep.subr.mxu0 0.0
    %182 = vmatpush1.msra.mxu0 0.0
    %183 = vmatprep.subr.mxu0 0.0
    %184 = vmatpush1.msra.mxu0 0.0
    %185 = vmatprep.subr.mxu0 0.0
    %186 = vmatpush1.msra.mxu0 0.0
    %187 = vmatprep.subr.mxu0 0.0
    %188 = vmatpush1.msra.mxu0 0.0
    %189 = vmatprep.subr.mxu0 0.0
    %190 = vmatpush1.msra.mxu0 0.0
    %191 = vmatprep.mubr.f32.mxu0 0.0
    %192 = vmatmul.mubr.f32.gmra.mrb[0].mxu0 %v122
    %v193 = vpop.f32.mrb[0].mxu0
    %v194 = vadd.f32 0.0, %v193
    %v195 = vpop.f32.mrb[0].mxu0
    %196 = vmatprep.mubr.f32.mxu0 0.0
    %197 = vmatmul.mubr.f32.gmra.mrb[0].mxu0 %v125
    %v198 = vpop.f32.mrb[0].mxu0
    %v199 = vadd.f32 0.0, %v198
    %v200 = vpop.f32.mrb[0].mxu0
    %201 = vdwg.mxu0
    %v202 = vld [vmem:[#allocation3] sm:$0xff]
    %v203 = vld [vmem:[#allocation3 + $0x8] sm:$0xff]
    %v204 = vld [vmem:[#allocation3 + $0x10] sm:$0xff]
    %v205 = vld [vmem:[#allocation3 + $0x18] sm:$0xff]
    %v206 = vld [vmem:[#allocation3 + $0x20] sm:$0xff]
    %v207 = vld [vmem:[#allocation3 + $0x28] sm:$0xff]
    %v208 = vld [vmem:[#allocation3 + $0x30] sm:$0xff]
    %v209 = vld [vmem:[#allocation3 + $0x38] sm:$0xff]
    %v210 = vld [vmem:[#allocation3 + $0x40] sm:$0xff]
    %v211 = vld [vmem:[#allocation3 + $0x48] sm:$0xff]
    %v212 = vld [vmem:[#allocation3 + $0x50] sm:$0xff]
    %v213 = vld [vmem:[#allocation3 + $0x58] sm:$0xff]
    %v214 = vld [vmem:[#allocation3 + $0x60] sm:$0xff]
    %v215 = vld [vmem:[#allocation3 + $0x68] sm:$0xff]
    %v216 = vld [vmem:[#allocation3 + $0x70] sm:$0xff]
    %v217 = vld [vmem:[#allocation3 + $0x78] sm:$0xff]
    %v218 = vld [vmem:[#allocation6] sm:$0xff]
    %v219 = vld [vmem:[#allocation6 + $0x8] sm:$0xff]
    %v220 = vld [vmem:[#allocation6 + $0x10] sm:$0xff]
    %v221 = vld [vmem:[#allocation6 + $0x18] sm:$0xff]
    %v222 = vld [vmem:[#allocation6 + $0x20] sm:$0xff]
    %v223 = vld [vmem:[#allocation6 + $0x28] sm:$0xff]
    %v224 = vld [vmem:[#allocation6 + $0x30] sm:$0xff]
    %v225 = vld [vmem:[#allocation6 + $0x38] sm:$0xff]
    %v226 = vld [vmem:[#allocation6 + $0x40] sm:$0xff]
    %v227 = vld [vmem:[#allocation6 + $0x48] sm:$0xff]
    %v228 = vld [vmem:[#allocation6 + $0x50] sm:$0xff]
    %v229 = vld [vmem:[#allocation6 + $0x58] sm:$0xff]
    %v230 = vld [vmem:[#allocation6 + $0x60] sm:$0xff]
    %v231 = vld [vmem:[#allocation6 + $0x68] sm:$0xff]
    %v232 = vld [vmem:[#allocation6 + $0x70] sm:$0xff]
    %v233 = vld [vmem:[#allocation6 + $0x78] sm:$0xff]
    %234 = vmatprep.subr.mxu0 0.0
    %235 = vmatpush1.msra.mxu0 %v218
    %236 = vmatprep.subr.mxu0 0.0
    %237 = vmatpush1.msra.mxu0 %v219
    %238 = vmatprep.subr.mxu0 0.0
    %239 = vmatpush1.msra.mxu0 %v220
    %240 = vmatprep.subr.mxu0 0.0
    %241 = vmatpush1.msra.mxu0 %v221
    %242 = vmatprep.subr.mxu0 0.0
    %243 = vmatpush1.msra.mxu0 %v222
    %244 = vmatprep.subr.mxu0 0.0
    %245 = vmatpush1.msra.mxu0 %v223
    %246 = vmatprep.subr.mxu0 0.0
    %247 = vmatpush1.msra.mxu0 %v224
    %248 = vmatprep.subr.mxu0 0.0
    %249 = vmatpush1.msra.mxu0 %v225
    %250 = vmatprep.subr.mxu0 0.0
    %251 = vmatpush1.msra.mxu0 %v226
    %252 = vmatprep.subr.mxu0 0.0
    %253 = vmatpush1.msra.mxu0 %v227
    %254 = vmatprep.subr.mxu0 0.0
    %255 = vmatpush1.msra.mxu0 %v228
    %256 = vmatprep.subr.mxu0 0.0
    %257 = vmatpush1.msra.mxu0 %v229
    %258 = vmatprep.subr.mxu0 0.0
    %259 = vmatpush1.msra.mxu0 %v230
    %260 = vmatprep.subr.mxu0 0.0
    %261 = vmatpush1.msra.mxu0 %v231
    %262 = vmatprep.subr.mxu0 0.0
    %263 = vmatpush1.msra.mxu0 %v232
    %264 = vmatprep.subr.mxu0 0.0
    %265 = vmatpush1.msra.mxu0 %v233
    %266 = vmatprep.subr.mxu0 0.0
    %267 = vmatpush1.msra.mxu0 0.0
    %268 = vmatprep.subr.mxu0 0.0
    %269 = vmatpush1.msra.mxu0 0.0
    %270 = vmatprep.subr.mxu0 0.0
    %271 = vmatpush1.msra.mxu0 0.0
    %272 = vmatprep.subr.mxu0 0.0
    %273 = vmatpush1.msra.mxu0 0.0
    %274 = vmatprep.subr.mxu0 0.0
    %275 = vmatpush1.msra.mxu0 0.0
    %276 = vmatprep.subr.mxu0 0.0
    %277 = vmatpush1.msra.mxu0 0.0
    %278 = vmatprep.subr.mxu0 0.0
    %279 = vmatpush1.msra.mxu0 0.0
    %280 = vmatprep.subr.mxu0 0.0
    %281 = vmatpush1.msra.mxu0 0.0
    %282 = vmatprep.subr.mxu0 0.0
    %283 = vmatpush1.msra.mxu0 0.0
    %284 = vmatprep.subr.mxu0 0.0
    %285 = vmatpush1.msra.mxu0 0.0
    %286 = vmatprep.subr.mxu0 0.0
    %287 = vmatpush1.msra.mxu0 0.0
    %288 = vmatprep.subr.mxu0 0.0
    %289 = vmatpush1.msra.mxu0 0.0
    %290 = vmatprep.subr.mxu0 0.0
    %291 = vmatpush1.msra.mxu0 0.0
    %292 = vmatprep.subr.mxu0 0.0
    %293 = vmatpush1.msra.mxu0 0.0
    %294 = vmatprep.subr.mxu0 0.0
    %295 = vmatpush1.msra.mxu0 0.0
    %296 = vmatprep.subr.mxu0 0.0
    %297 = vmatpush1.msra.mxu0 0.0
    %298 = vmatprep.mubr.f32.mxu0 0.0
    %299 = vmatmul.mubr.f32.gmra.mrb[0].mxu0 %v118
    %v300 = vpop.f32.mrb[0].mxu0
    %v301 = vadd.f32 0.0, %v300
    %v302 = vpop.f32.mrb[0].mxu0
    %303 = vmatprep.mubr.f32.mxu0 0.0
    %304 = vmatmul.mubr.f32.gmra.mrb[0].mxu0 %v119
    %v305 = vpop.f32.mrb[0].mxu0
    %v306 = vadd.f32 0.0, %v305
    %v307 = vpop.f32.mrb[0].mxu0
    %308 = vdwg.mxu0
    %309 = vmatprep.subr.mxu0 0.0
    %310 = vmatpush1.msra.mxu0 %v202
    %311 = vmatprep.subr.mxu0 0.0
    %312 = vmatpush1.msra.mxu0 %v203
    %313 = vmatprep.subr.mxu0 0.0
    %314 = vmatpush1.msra.mxu0 %v204
    %315 = vmatprep.subr.mxu0 0.0
    %316 = vmatpush1.msra.mxu0 %v205
    %317 = vmatprep.subr.mxu0 0.0
    %318 = vmatpush1.msra.mxu0 %v206
    %319 = vmatprep.subr.mxu0 0.0
    %320 = vmatpush1.msra.mxu0 %v207
    %321 = vmatprep.subr.mxu0 0.0
    %322 = vmatpush1.msra.mxu0 %v208
    %323 = vmatprep.subr.mxu0 0.0
    %324 = vmatpush1.msra.mxu0 %v209
    %325 = vmatprep.subr.mxu0 0.0
    %326 = vmatpush1.msra.mxu0 %v210
    %327 = vmatprep.subr.mxu0 0.0
    %328 = vmatpush1.msra.mxu0 %v211
    %329 = vmatprep.subr.mxu0 0.0
    %330 = vmatpush1.msra.mxu0 %v212
    %331 = vmatprep.subr.mxu0 0.0
    %332 = vmatpush1.msra.mxu0 %v213
    %333 = vmatprep.subr.mxu0 0.0
    %334 = vmatpush1.msra.mxu0 %v214
    %335 = vmatprep.subr.mxu0 0.0
    %336 = vmatpush1.msra.mxu0 %v215
    %337 = vmatprep.subr.mxu0 0.0
    %338 = vmatpush1.msra.mxu0 %v216
    %339 = vmatprep.subr.mxu0 0.0
    %340 = vmatpush1.msra.mxu0 %v217
    %341 = vmatprep.subr.mxu0 0.0
    %342 = vmatpush1.msra.mxu0 0.0
    %343 = vmatprep.subr.mxu0 0.0
    %344 = vmatpush1.msra.mxu0 0.0
    %345 = vmatprep.subr.mxu0 0.0
    %346 = vmatpush1.msra.mxu0 0.0
    %347 = vmatprep.subr.mxu0 0.0
    %348 = vmatpush1.msra.mxu0 0.0
    %349 = vmatprep.subr.mxu0 0.0
    %350 = vmatpush1.msra.mxu0 0.0
    %351 = vmatprep.subr.mxu0 0.0
    %352 = vmatpush1.msra.mxu0 0.0
    %353 = vmatprep.subr.mxu0 0.0
    %354 = vmatpush1.msra.mxu0 0.0
    %355 = vmatprep.subr.mxu0 0.0
    %356 = vmatpush1.msra.mxu0 0.0
    %357 = vmatprep.subr.mxu0 0.0
    %358 = vmatpush1.msra.mxu0 0.0
    %359 = vmatprep.subr.mxu0 0.0
    %360 = vmatpush1.msra.mxu0 0.0
    %361 = vmatprep.subr.mxu0 0.0
    %362 = vmatpush1.msra.mxu0 0.0
    %363 = vmatprep.subr.mxu0 0.0
    %364 = vmatpush1.msra.mxu0 0.0
    %365 = vmatprep.subr.mxu0 0.0
    %366 = vmatpush1.msra.mxu0 0.0
    %367 = vmatprep.subr.mxu0 0.0
    %368 = vmatpush1.msra.mxu0 0.0
    %369 = vmatprep.subr.mxu0 0.0
    %370 = vmatpush1.msra.mxu0 0.0
    %371 = vmatprep.subr.mxu0 0.0
    %372 = vmatpush1.msra.mxu0 0.0
    %373 = vmatprep.mubr.f32.mxu0 0.0
    %374 = vmatmul.mubr.f32.gmra.mrb[0].mxu0 %v194
    %v375 = vpop.f32.mrb[0].mxu0
    %v376 = vadd.f32 %v301, %v375
    %v377 = vpop.f32.mrb[0].mxu0
    %378 = vmatprep.mubr.f32.mxu0 0.0
    %379 = vmatmul.mubr.f32.gmra.mrb[0].mxu0 %v199
    %v380 = vpop.f32.mrb[0].mxu0
    %v381 = vadd.f32 %v306, %v380
    %v382 = vpop.f32.mrb[0].mxu0
    %383 = vdwg.mxu0
    %v384 = vld [vmem:[%s4] sm:$0x1]
    %v386 = vlaneseq
    %v387 = vshrl.u32 %v386, 7
    %v388 = vsub.s32 0, %v387
    %v389 = vrot.slane %v384, %v388
    %v391 = vadd.f32 %v376, %v389
    %v392 = vadd.f32 %v381, %v389
    %393 = vst [vmem:[#allocation2] sm:$0xff] %v391
    %394 = vst [vmem:[#allocation2 + $0x8] sm:$0xff] %v392
    %v395 = vld [vmem:[#allocation2] sm:$0xff]
    %v396 = vld [vmem:[#allocation2 + $0x8] sm:$0xff]
    %v397 = vld [vmem:[#allocation8] sm:$0xff]
    %v398 = vld [vmem:[#allocation8 + $0x8] sm:$0xff]
    %v399 = vld [vmem:[#allocation8 + $0x10] sm:$0xff]
    %v400 = vld [vmem:[#allocation8 + $0x18] sm:$0xff]
    %v401 = vld [vmem:[#allocation8 + $0x20] sm:$0xff]
    %v402 = vld [vmem:[#allocation8 + $0x28] sm:$0xff]
    %v403 = vld [vmem:[#allocation8 + $0x30] sm:$0xff]
    %v404 = vld [vmem:[#allocation8 + $0x38] sm:$0xff]
    %v405 = vld [vmem:[#allocation8 + $0x40] sm:$0xff]
    %v406 = vld [vmem:[#allocation8 + $0x48] sm:$0xff]
    %v407 = vld [vmem:[#allocation8 + $0x50] sm:$0xff]
    %v408 = vld [vmem:[#allocation8 + $0x58] sm:$0xff]
    %v409 = vld [vmem:[#allocation8 + $0x60] sm:$0xff]
    %v410 = vld [vmem:[#allocation8 + $0x68] sm:$0xff]
    %v411 = vld [vmem:[#allocation8 + $0x70] sm:$0xff]
    %v412 = vld [vmem:[#allocation8 + $0x78] sm:$0xff]
    %v413 = vld [vmem:[#allocation8 + $0x80] sm:$0xff]
    %v414 = vld [vmem:[#allocation8 + $0x88] sm:$0xff]
    %v415 = vld [vmem:[#allocation8 + $0x90] sm:$0xff]
    %v416 = vld [vmem:[#allocation8 + $0x98] sm:$0xff]
    %v417 = vld [vmem:[#allocation8 + $0xa0] sm:$0xff]
    %v418 = vld [vmem:[#allocation8 + $0xa8] sm:$0xff]
    %v419 = vld [vmem:[#allocation8 + $0xb0] sm:$0xff]
    %v420 = vld [vmem:[#allocation8 + $0xb8] sm:$0xff]
    %v421 = vld [vmem:[#allocation8 + $0xc0] sm:$0xff]
    %v422 = vld [vmem:[#allocation8 + $0xc8] sm:$0xff]
    %v423 = vld [vmem:[#allocation8 + $0xd0] sm:$0xff]
    %v424 = vld [vmem:[#allocation8 + $0xd8] sm:$0xff]
    %v425 = vld [vmem:[#allocation8 + $0xe0] sm:$0xff]
    %v426 = vld [vmem:[#allocation8 + $0xe8] sm:$0xff]
    %v427 = vld [vmem:[#allocation8 + $0xf0] sm:$0xff]
    %v428 = vld [vmem:[#allocation8 + $0xf8] sm:$0xff]
    %429 = vmatprep.subr.mxu0 %v398
    %430 = vmatpush1.msra.mxu0 %v397
    %431 = vmatprep.subr.mxu0 %v400
    %432 = vmatpush1.msra.mxu0 %v399
    %433 = vmatprep.subr.mxu0 %v402
    %434 = vmatpush1.msra.mxu0 %v401
    %435 = vmatprep.subr.mxu0 %v404
    %436 = vmatpush1.msra.mxu0 %v403
    %437 = vmatprep.subr.mxu0 %v406
    %438 = vmatpush1.msra.mxu0 %v405
    %439 = vmatprep.subr.mxu0 %v408
    %440 = vmatpush1.msra.mxu0 %v407
    %441 = vmatprep.subr.mxu0 %v410
    %442 = vmatpush1.msra.mxu0 %v409
    %443 = vmatprep.subr.mxu0 %v412
    %444 = vmatpush1.msra.mxu0 %v411
    %445 = vmatprep.subr.mxu0 %v414
    %446 = vmatpush1.msra.mxu0 %v413
    %447 = vmatprep.subr.mxu0 %v416
    %448 = vmatpush1.msra.mxu0 %v415
    %449 = vmatprep.subr.mxu0 %v418
    %450 = vmatpush1.msra.mxu0 %v417
    %451 = vmatprep.subr.mxu0 %v420
    %452 = vmatpush1.msra.mxu0 %v419
    %453 = vmatprep.subr.mxu0 %v422
    %454 = vmatpush1.msra.mxu0 %v421
    %455 = vmatprep.subr.mxu0 %v424
    %456 = vmatpush1.msra.mxu0 %v423
    %457 = vmatprep.subr.mxu0 %v426
    %458 = vmatpush1.msra.mxu0 %v425
    %459 = vmatprep.subr.mxu0 %v428
    %460 = vmatpush1.msra.mxu0 %v427
    %461 = vmatprep.subr.mxu0 0.0
    %462 = vmatpush1.msra.mxu0 0.0
    %463 = vmatprep.subr.mxu0 0.0
    %464 = vmatpush1.msra.mxu0 0.0
    %465 = vmatprep.subr.mxu0 0.0
    %466 = vmatpush1.msra.mxu0 0.0
    %467 = vmatprep.subr.mxu0 0.0
    %468 = vmatpush1.msra.mxu0 0.0
    %469 = vmatprep.subr.mxu0 0.0
    %470 = vmatpush1.msra.mxu0 0.0
    %471 = vmatprep.subr.mxu0 0.0
    %472 = vmatpush1.msra.mxu0 0.0
    %473 = vmatprep.subr.mxu0 0.0
    %474 = vmatpush1.msra.mxu0 0.0
    %475 = vmatprep.subr.mxu0 0.0
    %476 = vmatpush1.msra.mxu0 0.0
    %477 = vmatprep.subr.mxu0 0.0
    %478 = vmatpush1.msra.mxu0 0.0
    %479 = vmatprep.subr.mxu0 0.0
    %480 = vmatpush1.msra.mxu0 0.0
    %481 = vmatprep.subr.mxu0 0.0
    %482 = vmatpush1.msra.mxu0 0.0
    %483 = vmatprep.subr.mxu0 0.0
    %484 = vmatpush1.msra.mxu0 0.0
    %485 = vmatprep.subr.mxu0 0.0
    %486 = vmatpush1.msra.mxu0 0.0
    %487 = vmatprep.subr.mxu0 0.0
    %488 = vmatpush1.msra.mxu0 0.0
    %489 = vmatprep.subr.mxu0 0.0
    %490 = vmatpush1.msra.mxu0 0.0
    %491 = vmatprep.subr.mxu0 0.0
    %492 = vmatpush1.msra.mxu0 0.0
    %493 = vmatprep.mubr.f32.mxu0 0.0
    %494 = vmatmul.mubr.f32.gmra.mrb[0].mxu0 %v395
    %v495 = vpop.f32.mrb[0].mxu0
    %v496 = vadd.f32 0.0, %v495
    %v497 = vpop.f32.mrb[0].mxu0
    %v498 = vadd.f32 0.0, %v497
    %499 = vmatprep.mubr.f32.mxu0 0.0
    %500 = vmatmul.mubr.f32.gmra.mrb[0].mxu0 %v396
    %v501 = vpop.f32.mrb[0].mxu0
    %v502 = vadd.f32 0.0, %v501
    %v503 = vpop.f32.mrb[0].mxu0
    %v504 = vadd.f32 0.0, %v503
    %505 = vdwg.mxu0
    %506 = vmatprep.subr.mxu0 0.0
    %507 = vmatpush1.msra.mxu0 %v496
    %508 = vmatprep.subr.mxu0 0.0
    %509 = vmatpush1.msra.mxu0 %v502
    %510 = vmatprep.subr.mxu0 0.0
    %511 = vmatpush1.msra.mxu0 0.0
    %512 = vmatprep.subr.mxu0 0.0
    %513 = vmatpush1.msra.mxu0 0.0
    %514 = vmatprep.subr.mxu0 0.0
    %515 = vmatpush1.msra.mxu0 0.0
    %516 = vmatprep.subr.mxu0 0.0
    %517 = vmatpush1.msra.mxu0 0.0
    %518 = vmatprep.subr.mxu0 0.0
    %519 = vmatpush1.msra.mxu0 0.0
    %520 = vmatprep.subr.mxu0 0.0
    %521 = vmatpush1.msra.mxu0 0.0
    %522 = vmatprep.subr.mxu0 0.0
    %523 = vmatpush1.msra.mxu0 0.0
    %524 = vmatprep.subr.mxu0 0.0
    %525 = vmatpush1.msra.mxu0 0.0
    %526 = vmatprep.subr.mxu0 0.0
    %527 = vmatpush1.msra.mxu0 0.0
    %528 = vmatprep.subr.mxu0 0.0
    %529 = vmatpush1.msra.mxu0 0.0
    %530 = vmatprep.subr.mxu0 0.0
    %531 = vmatpush1.msra.mxu0 0.0
    %532 = vmatprep.subr.mxu0 0.0
    %533 = vmatpush1.msra.mxu0 0.0
    %534 = vmatprep.subr.mxu0 0.0
    %535 = vmatpush1.msra.mxu0 0.0
    %536 = vmatprep.subr.mxu0 0.0
    %537 = vmatpush1.msra.mxu0 0.0
    %538 = vmatprep.subr.mxu0 0.0
    %539 = vmatpush1.msra.mxu0 0.0
    %540 = vmatprep.subr.mxu0 0.0
    %541 = vmatpush1.msra.mxu0 0.0
    %542 = vmatprep.subr.mxu0 0.0
    %543 = vmatpush1.msra.mxu0 0.0
    %544 = vmatprep.subr.mxu0 0.0
    %545 = vmatpush1.msra.mxu0 0.0
    %546 = vmatprep.subr.mxu0 0.0
    %547 = vmatpush1.msra.mxu0 0.0
    %548 = vmatprep.subr.mxu0 0.0
    %549 = vmatpush1.msra.mxu0 0.0
    %550 = vmatprep.subr.mxu0 0.0
    %551 = vmatpush1.msra.mxu0 0.0
    %552 = vmatprep.subr.mxu0 0.0
    %553 = vmatpush1.msra.mxu0 0.0
    %554 = vmatprep.subr.mxu0 0.0
    %555 = vmatpush1.msra.mxu0 0.0
    %556 = vmatprep.subr.mxu0 0.0
    %557 = vmatpush1.msra.mxu0 0.0
    %558 = vmatprep.subr.mxu0 0.0
    %559 = vmatpush1.msra.mxu0 0.0
    %560 = vmatprep.subr.mxu0 0.0
    %561 = vmatpush1.msra.mxu0 0.0
    %562 = vmatprep.subr.mxu0 0.0
    %563 = vmatpush1.msra.mxu0 0.0
    %564 = vmatprep.subr.mxu0 0.0
    %565 = vmatpush1.msra.mxu0 0.0
    %566 = vmatprep.subr.mxu0 0.0
    %567 = vmatpush1.msra.mxu0 0.0
    %568 = vmatprep.subr.mxu0 0.0
    %569 = vmatpush1.msra.mxu0 0.0
    %570 = vmatprep.mubr.f32.mxu0 0.0
    %571 = vmatmul.mubr.f32.gmra.mrb[0].mxu0 %v122
    %v572 = vpop.f32.mrb[0].mxu0
    %v573 = vadd.f32 %v498, %v572
    %v574 = vpop.f32.mrb[0].mxu0
    %575 = vmatprep.mubr.f32.mxu0 0.0
    %576 = vmatmul.mubr.f32.gmra.mrb[0].mxu0 %v125
    %v577 = vpop.f32.mrb[0].mxu0
    %v578 = vadd.f32 %v504, %v577
    %v579 = vpop.f32.mrb[0].mxu0
    %580 = vdwg.mxu0
    %v581 = vld [vmem:[%s6] sm:$0x1]
    %v583 = vlaneseq
    %v584 = vshrl.u32 %v583, 7
    %v585 = vsub.s32 0, %v584
    %v586 = vrot.slane %v581, %v585
    %v588 = vadd.f32 %v573, %v586
    %v589 = vadd.f32 %v578, %v586
    %590 = vst [vmem:[#allocation2] sm:$0xff] %v588
    %591 = vst [vmem:[#allocation2 + $0x8] sm:$0xff] %v589
    %v592 = vld [vmem:[#allocation2] sm:$0xff]
    %v593 = vld [vmem:[#allocation2 + $0x8] sm:$0xff]
    %v594 = vld [vmem:[#allocation9] sm:$0xff]
    %v595 = vld [vmem:[#allocation9 + $0x8] sm:$0xff]
    %v596 = vld [vmem:[#allocation9 + $0x10] sm:$0xff]
    %v597 = vld [vmem:[#allocation9 + $0x18] sm:$0xff]
    %v598 = vld [vmem:[#allocation9 + $0x20] sm:$0xff]
    %v599 = vld [vmem:[#allocation9 + $0x28] sm:$0xff]
    %v600 = vld [vmem:[#allocation9 + $0x30] sm:$0xff]
    %v601 = vld [vmem:[#allocation9 + $0x38] sm:$0xff]
    %v602 = vld [vmem:[#allocation9 + $0x40] sm:$0xff]
    %v603 = vld [vmem:[#allocation9 + $0x48] sm:$0xff]
    %v604 = vld [vmem:[#allocation9 + $0x50] sm:$0xff]
    %v605 = vld [vmem:[#allocation9 + $0x58] sm:$0xff]
    %v606 = vld [vmem:[#allocation9 + $0x60] sm:$0xff]
    %v607 = vld [vmem:[#allocation9 + $0x68] sm:$0xff]
    %v608 = vld [vmem:[#allocation9 + $0x70] sm:$0xff]
    %v609 = vld [vmem:[#allocation9 + $0x78] sm:$0xff]
    %v610 = vld [vmem:[#allocation9 + $0x80] sm:$0xff]
    %v611 = vld [vmem:[#allocation9 + $0x88] sm:$0xff]
    %v612 = vld [vmem:[#allocation9 + $0x90] sm:$0xff]
    %v613 = vld [vmem:[#allocation9 + $0x98] sm:$0xff]
    %v614 = vld [vmem:[#allocation9 + $0xa0] sm:$0xff]
    %v615 = vld [vmem:[#allocation9 + $0xa8] sm:$0xff]
    %v616 = vld [vmem:[#allocation9 + $0xb0] sm:$0xff]
    %v617 = vld [vmem:[#allocation9 + $0xb8] sm:$0xff]
    %v618 = vld [vmem:[#allocation9 + $0xc0] sm:$0xff]
    %v619 = vld [vmem:[#allocation9 + $0xc8] sm:$0xff]
    %v620 = vld [vmem:[#allocation9 + $0xd0] sm:$0xff]
    %v621 = vld [vmem:[#allocation9 + $0xd8] sm:$0xff]
    %v622 = vld [vmem:[#allocation9 + $0xe0] sm:$0xff]
    %v623 = vld [vmem:[#allocation9 + $0xe8] sm:$0xff]
    %v624 = vld [vmem:[#allocation9 + $0xf0] sm:$0xff]
    %v625 = vld [vmem:[#allocation9 + $0xf8] sm:$0xff]
    %626 = vmatprep.subr.mxu0 %v595
    %627 = vmatpush1.msra.mxu0 %v594
    %628 = vmatprep.subr.mxu0 %v597
    %629 = vmatpush1.msra.mxu0 %v596
    %630 = vmatprep.subr.mxu0 %v599
    %631 = vmatpush1.msra.mxu0 %v598
    %632 = vmatprep.subr.mxu0 %v601
    %633 = vmatpush1.msra.mxu0 %v600
    %634 = vmatprep.subr.mxu0 %v603
    %635 = vmatpush1.msra.mxu0 %v602
    %636 = vmatprep.subr.mxu0 %v605
    %637 = vmatpush1.msra.mxu0 %v604
    %638 = vmatprep.subr.mxu0 %v607
    %639 = vmatpush1.msra.mxu0 %v606
    %640 = vmatprep.subr.mxu0 %v609
    %641 = vmatpush1.msra.mxu0 %v608
    %642 = vmatprep.subr.mxu0 %v611
    %643 = vmatpush1.msra.mxu0 %v610
    %644 = vmatprep.subr.mxu0 %v613
    %645 = vmatpush1.msra.mxu0 %v612
    %646 = vmatprep.subr.mxu0 %v615
    %647 = vmatpush1.msra.mxu0 %v614
    %648 = vmatprep.subr.mxu0 %v617
    %649 = vmatpush1.msra.mxu0 %v616
    %650 = vmatprep.subr.mxu0 %v619
    %651 = vmatpush1.msra.mxu0 %v618
    %652 = vmatprep.subr.mxu0 %v621
    %653 = vmatpush1.msra.mxu0 %v620
    %654 = vmatprep.subr.mxu0 %v623
    %655 = vmatpush1.msra.mxu0 %v622
    %656 = vmatprep.subr.mxu0 %v625
    %657 = vmatpush1.msra.mxu0 %v624
    %658 = vmatprep.subr.mxu0 0.0
    %659 = vmatpush1.msra.mxu0 0.0
    %660 = vmatprep.subr.mxu0 0.0
    %661 = vmatpush1.msra.mxu0 0.0
    %662 = vmatprep.subr.mxu0 0.0
    %663 = vmatpush1.msra.mxu0 0.0
    %664 = vmatprep.subr.mxu0 0.0
    %665 = vmatpush1.msra.mxu0 0.0
    %666 = vmatprep.subr.mxu0 0.0
    %667 = vmatpush1.msra.mxu0 0.0
    %668 = vmatprep.subr.mxu0 0.0
    %669 = vmatpush1.msra.mxu0 0.0
    %670 = vmatprep.subr.mxu0 0.0
    %671 = vmatpush1.msra.mxu0 0.0
    %672 = vmatprep.subr.mxu0 0.0
    %673 = vmatpush1.msra.mxu0 0.0
    %674 = vmatprep.subr.mxu0 0.0
    %675 = vmatpush1.msra.mxu0 0.0
    %676 = vmatprep.subr.mxu0 0.0
    %677 = vmatpush1.msra.mxu0 0.0
    %678 = vmatprep.subr.mxu0 0.0
    %679 = vmatpush1.msra.mxu0 0.0
    %680 = vmatprep.subr.mxu0 0.0
    %681 = vmatpush1.msra.mxu0 0.0
    %682 = vmatprep.subr.mxu0 0.0
    %683 = vmatpush1.msra.mxu0 0.0
    %684 = vmatprep.subr.mxu0 0.0
    %685 = vmatpush1.msra.mxu0 0.0
    %686 = vmatprep.subr.mxu0 0.0
    %687 = vmatpush1.msra.mxu0 0.0
    %688 = vmatprep.subr.mxu0 0.0
    %689 = vmatpush1.msra.mxu0 0.0
    %690 = vmatprep.mubr.f32.mxu0 0.0
    %691 = vmatmul.mubr.f32.gmra.mrb[0].mxu0 %v592
    %v692 = vpop.f32.mrb[0].mxu0
    %v693 = vadd.f32 0.0, %v692
    %v694 = vpop.f32.mrb[0].mxu0
    %v695 = vadd.f32 0.0, %v694
    %696 = vmatprep.mubr.f32.mxu0 0.0
    %697 = vmatmul.mubr.f32.gmra.mrb[0].mxu0 %v593
    %v698 = vpop.f32.mrb[0].mxu0
    %v699 = vadd.f32 0.0, %v698
    %v700 = vpop.f32.mrb[0].mxu0
    %v701 = vadd.f32 0.0, %v700
    %702 = vdwg.mxu0
    %703 = vmatprep.subr.mxu0 0.0
    %704 = vmatpush1.msra.mxu0 %v693
    %705 = vmatprep.subr.mxu0 0.0
    %706 = vmatpush1.msra.mxu0 %v699
    %707 = vmatprep.subr.mxu0 0.0
    %708 = vmatpush1.msra.mxu0 0.0
    %709 = vmatprep.subr.mxu0 0.0
    %710 = vmatpush1.msra.mxu0 0.0
    %711 = vmatprep.subr.mxu0 0.0
    %712 = vmatpush1.msra.mxu0 0.0
    %713 = vmatprep.subr.mxu0 0.0
    %714 = vmatpush1.msra.mxu0 0.0
    %715 = vmatprep.subr.mxu0 0.0
    %716 = vmatpush1.msra.mxu0 0.0
    %717 = vmatprep.subr.mxu0 0.0
    %718 = vmatpush1.msra.mxu0 0.0
    %719 = vmatprep.subr.mxu0 0.0
    %720 = vmatpush1.msra.mxu0 0.0
    %721 = vmatprep.subr.mxu0 0.0
    %722 = vmatpush1.msra.mxu0 0.0
    %723 = vmatprep.subr.mxu0 0.0
    %724 = vmatpush1.msra.mxu0 0.0
    %725 = vmatprep.subr.mxu0 0.0
    %726 = vmatpush1.msra.mxu0 0.0
    %727 = vmatprep.subr.mxu0 0.0
    %728 = vmatpush1.msra.mxu0 0.0
    %729 = vmatprep.subr.mxu0 0.0
    %730 = vmatpush1.msra.mxu0 0.0
    %731 = vmatprep.subr.mxu0 0.0
    %732 = vmatpush1.msra.mxu0 0.0
    %733 = vmatprep.subr.mxu0 0.0
    %734 = vmatpush1.msra.mxu0 0.0
    %735 = vmatprep.subr.mxu0 0.0
    %736 = vmatpush1.msra.mxu0 0.0
    %737 = vmatprep.subr.mxu0 0.0
    %738 = vmatpush1.msra.mxu0 0.0
    %739 = vmatprep.subr.mxu0 0.0
    %740 = vmatpush1.msra.mxu0 0.0
    %741 = vmatprep.subr.mxu0 0.0
    %742 = vmatpush1.msra.mxu0 0.0
    %743 = vmatprep.subr.mxu0 0.0
    %744 = vmatpush1.msra.mxu0 0.0
    %745 = vmatprep.subr.mxu0 0.0
    %746 = vmatpush1.msra.mxu0 0.0
    %747 = vmatprep.subr.mxu0 0.0
    %748 = vmatpush1.msra.mxu0 0.0
    %749 = vmatprep.subr.mxu0 0.0
    %750 = vmatpush1.msra.mxu0 0.0
    %751 = vmatprep.subr.mxu0 0.0
    %752 = vmatpush1.msra.mxu0 0.0
    %753 = vmatprep.subr.mxu0 0.0
    %754 = vmatpush1.msra.mxu0 0.0
    %755 = vmatprep.subr.mxu0 0.0
    %756 = vmatpush1.msra.mxu0 0.0
    %757 = vmatprep.subr.mxu0 0.0
    %758 = vmatpush1.msra.mxu0 0.0
    %759 = vmatprep.subr.mxu0 0.0
    %760 = vmatpush1.msra.mxu0 0.0
    %761 = vmatprep.subr.mxu0 0.0
    %762 = vmatpush1.msra.mxu0 0.0
    %763 = vmatprep.subr.mxu0 0.0
    %764 = vmatpush1.msra.mxu0 0.0
    %765 = vmatprep.subr.mxu0 0.0
    %766 = vmatpush1.msra.mxu0 0.0
    %767 = vmatprep.mubr.f32.mxu0 0.0
    %768 = vmatmul.mubr.f32.gmra.mrb[0].mxu0 %v122
    %v769 = vpop.f32.mrb[0].mxu0
    %v770 = vadd.f32 %v695, %v769
    %v771 = vpop.f32.mrb[0].mxu0
    %772 = vmatprep.mubr.f32.mxu0 0.0
    %773 = vmatmul.mubr.f32.gmra.mrb[0].mxu0 %v125
    %v774 = vpop.f32.mrb[0].mxu0
    %v775 = vadd.f32 %v701, %v774
    %v776 = vpop.f32.mrb[0].mxu0
    %777 = vdwg.mxu0
    %v778 = vld [vmem:[%s8] sm:$0x1]
    %v780 = vlaneseq
    %v781 = vshrl.u32 %v780, 7
    %v782 = vsub.s32 0, %v781
    %v783 = vrot.slane %v778, %v782
    %v785 = vadd.f32 %v770, %v783
    %v786 = vadd.f32 %v775, %v783
    %787 = vst [vmem:[#allocation2] sm:$0xff] %v785
    %788 = vst [vmem:[#allocation2 + $0x8] sm:$0xff] %v786
    %v789 = vld [vmem:[%s9] sm:$0x3]
    %v790 = vld [vmem:[#allocation2] sm:$0xff]
    %v791 = vld [vmem:[#allocation2 + $0x8] sm:$0xff]
    %v793 = vsel %vm120, %v789, 0
    %795 = vmatprep.subr.mxu0 0.0
    %796 = vmatpush1.msra.mxu0 %v790
    %797 = vmatprep.subr.mxu0 0.0
    %798 = vmatpush1.msra.mxu0 %v791
    %799 = vmatprep.subr.mxu0 0.0
    %800 = vmatpush1.msra.mxu0 0.0
    %801 = vmatprep.subr.mxu0 0.0
    %802 = vmatpush1.msra.mxu0 0.0
    %803 = vmatprep.subr.mxu0 0.0
    %804 = vmatpush1.msra.mxu0 0.0
    %805 = vmatprep.subr.mxu0 0.0
    %806 = vmatpush1.msra.mxu0 0.0
    %807 = vmatprep.subr.mxu0 0.0
    %808 = vmatpush1.msra.mxu0 0.0
    %809 = vmatprep.subr.mxu0 0.0
    %810 = vmatpush1.msra.mxu0 0.0
    %811 = vmatprep.subr.mxu0 0.0
    %812 = vmatpush1.msra.mxu0 0.0
    %813 = vmatprep.subr.mxu0 0.0
    %814 = vmatpush1.msra.mxu0 0.0
    %815 = vmatprep.subr.mxu0 0.0
    %816 = vmatpush1.msra.mxu0 0.0
    %817 = vmatprep.subr.mxu0 0.0
    %818 = vmatpush1.msra.mxu0 0.0
    %819 = vmatprep.subr.mxu0 0.0
    %820 = vmatpush1.msra.mxu0 0.0
    %821 = vmatprep.subr.mxu0 0.0
    %822 = vmatpush1.msra.mxu0 0.0
    %823 = vmatprep.subr.mxu0 0.0
    %824 = vmatpush1.msra.mxu0 0.0
    %825 = vmatprep.subr.mxu0 0.0
    %826 = vmatpush1.msra.mxu0 0.0
    %827 = vmatprep.subr.mxu0 0.0
    %828 = vmatpush1.msra.mxu0 0.0
    %829 = vmatprep.subr.mxu0 0.0
    %830 = vmatpush1.msra.mxu0 0.0
    %831 = vmatprep.subr.mxu0 0.0
    %832 = vmatpush1.msra.mxu0 0.0
    %833 = vmatprep.subr.mxu0 0.0
    %834 = vmatpush1.msra.mxu0 0.0
    %835 = vmatprep.subr.mxu0 0.0
    %836 = vmatpush1.msra.mxu0 0.0
    %837 = vmatprep.subr.mxu0 0.0
    %838 = vmatpush1.msra.mxu0 0.0
    %839 = vmatprep.subr.mxu0 0.0
    %840 = vmatpush1.msra.mxu0 0.0
    %841 = vmatprep.subr.mxu0 0.0
    %842 = vmatpush1.msra.mxu0 0.0
    %843 = vmatprep.subr.mxu0 0.0
    %844 = vmatpush1.msra.mxu0 0.0
    %845 = vmatprep.subr.mxu0 0.0
    %846 = vmatpush1.msra.mxu0 0.0
    %847 = vmatprep.subr.mxu0 0.0
    %848 = vmatpush1.msra.mxu0 0.0
    %849 = vmatprep.subr.mxu0 0.0
    %850 = vmatpush1.msra.mxu0 0.0
    %851 = vmatprep.subr.mxu0 0.0
    %852 = vmatpush1.msra.mxu0 0.0
    %853 = vmatprep.subr.mxu0 0.0
    %854 = vmatpush1.msra.mxu0 0.0
    %855 = vmatprep.subr.mxu0 0.0
    %856 = vmatpush1.msra.mxu0 0.0
    %857 = vmatprep.subr.mxu0 0.0
    %858 = vmatpush1.msra.mxu0 0.0
    %859 = vmatprep.mubr.f32.mxu0 0.0
    %860 = vmatmul.mubr.f32.gmra.mrb[0].mxu0 %v793
    %v861 = vpop.f32.mrb[0].mxu0
    %v862 = vadd.f32 0.0, %v861
    %v863 = vpop.f32.mrb[0].mxu0
    %864 = vdwg.mxu0
    %v865 = vld [vmem:[#allocation11] sm:$0xff]
    %v866 = vld [vmem:[#allocation11 + $0x8] sm:$0xff]
    %v867 = vld [vmem:[#allocation11 + $0x10] sm:$0xff]
    %v868 = vld [vmem:[#allocation11 + $0x18] sm:$0xff]
    %v869 = vld [vmem:[#allocation11 + $0x20] sm:$0xff]
    %v870 = vld [vmem:[#allocation11 + $0x28] sm:$0xff]
    %v871 = vld [vmem:[#allocation11 + $0x30] sm:$0xff]
    %v872 = vld [vmem:[#allocation11 + $0x38] sm:$0xff]
    %v873 = vld [vmem:[#allocation11 + $0x40] sm:$0xff]
    %v874 = vld [vmem:[#allocation11 + $0x48] sm:$0xff]
    %v875 = vld [vmem:[#allocation11 + $0x50] sm:$0xff]
    %v876 = vld [vmem:[#allocation11 + $0x58] sm:$0xff]
    %v877 = vld [vmem:[#allocation11 + $0x60] sm:$0xff]
    %v878 = vld [vmem:[#allocation11 + $0x68] sm:$0xff]
    %v879 = vld [vmem:[#allocation11 + $0x70] sm:$0xff]
    %v880 = vld [vmem:[#allocation11 + $0x78] sm:$0xff]
    %v881 = vld [vmem:[%s11] sm:$0x1]
    %v883 = vlaneseq
    %v884 = vshrl.u32 %v883, 7
    %v885 = vsub.s32 0, %v884
    %v886 = vrot.slane %v881, %v885
    %888 = vmatprep.subr.mxu0 0.0
    %889 = vmatpush1.msra.mxu0 %v865
    %890 = vmatprep.subr.mxu0 0.0
    %891 = vmatpush1.msra.mxu0 %v866
    %892 = vmatprep.subr.mxu0 0.0
    %893 = vmatpush1.msra.mxu0 %v867
    %894 = vmatprep.subr.mxu0 0.0
    %895 = vmatpush1.msra.mxu0 %v868
    %896 = vmatprep.subr.mxu0 0.0
    %897 = vmatpush1.msra.mxu0 %v869
    %898 = vmatprep.subr.mxu0 0.0
    %899 = vmatpush1.msra.mxu0 %v870
    %900 = vmatprep.subr.mxu0 0.0
    %901 = vmatpush1.msra.mxu0 %v871
    %902 = vmatprep.subr.mxu0 0.0
    %903 = vmatpush1.msra.mxu0 %v872
    %904 = vmatprep.subr.mxu0 0.0
    %905 = vmatpush1.msra.mxu0 %v873
    %906 = vmatprep.subr.mxu0 0.0
    %907 = vmatpush1.msra.mxu0 %v874
    %908 = vmatprep.subr.mxu0 0.0
    %909 = vmatpush1.msra.mxu0 %v875
    %910 = vmatprep.subr.mxu0 0.0
    %911 = vmatpush1.msra.mxu0 %v876
    %912 = vmatprep.subr.mxu0 0.0
    %913 = vmatpush1.msra.mxu0 %v877
    %914 = vmatprep.subr.mxu0 0.0
    %915 = vmatpush1.msra.mxu0 %v878
    %916 = vmatprep.subr.mxu0 0.0
    %917 = vmatpush1.msra.mxu0 %v879
    %918 = vmatprep.subr.mxu0 0.0
    %919 = vmatpush1.msra.mxu0 %v880
    %920 = vmatprep.subr.mxu0 0.0
    %921 = vmatpush1.msra.mxu0 0.0
    %922 = vmatprep.subr.mxu0 0.0
    %923 = vmatpush1.msra.mxu0 0.0
    %924 = vmatprep.subr.mxu0 0.0
    %925 = vmatpush1.msra.mxu0 0.0
    %926 = vmatprep.subr.mxu0 0.0
    %927 = vmatpush1.msra.mxu0 0.0
    %928 = vmatprep.subr.mxu0 0.0
    %929 = vmatpush1.msra.mxu0 0.0
    %930 = vmatprep.subr.mxu0 0.0
    %931 = vmatpush1.msra.mxu0 0.0
    %932 = vmatprep.subr.mxu0 0.0
    %933 = vmatpush1.msra.mxu0 0.0
    %934 = vmatprep.subr.mxu0 0.0
    %935 = vmatpush1.msra.mxu0 0.0
    %936 = vmatprep.subr.mxu0 0.0
    %937 = vmatpush1.msra.mxu0 0.0
    %938 = vmatprep.subr.mxu0 0.0
    %939 = vmatpush1.msra.mxu0 0.0
    %940 = vmatprep.subr.mxu0 0.0
    %941 = vmatpush1.msra.mxu0 0.0
    %942 = vmatprep.subr.mxu0 0.0
    %943 = vmatpush1.msra.mxu0 0.0
    %944 = vmatprep.subr.mxu0 0.0
    %945 = vmatpush1.msra.mxu0 0.0
    %946 = vmatprep.subr.mxu0 0.0
    %947 = vmatpush1.msra.mxu0 0.0
    %948 = vmatprep.subr.mxu0 0.0
    %949 = vmatpush1.msra.mxu0 0.0
    %950 = vmatprep.subr.mxu0 0.0
    %951 = vmatpush1.msra.mxu0 0.0
    %952 = vmatprep.mubr.f32.mxu0 0.0
    %953 = vmatmul.mubr.f32.gmra.mrb[0].mxu0 %v862
    %v954 = vpop.f32.mrb[0].mxu0
    %v955 = vadd.f32 %v886, %v954
    %v956 = vpop.f32.mrb[0].mxu0
    %957 = vdwg.mxu0
    %v958 = vlaneseq
    %v959 = vand.u32 %v958, 127
    %vm960 = vcmp.lt.s32.totalorder %v959, 6
    %v961 = vsel %vm960, %v955, -1e+30
    %vm962 = vcmask 1041408
    %v963 = vsel %vm962, %v961, -inf
    %964 = vmax.xlane.f32.xlu0 %v963
    %v965 = vpop.xlane.xlu0 %964
    %v966 = vsub.f32 %v961, %v965
    %v967 = vmul.f32 %v966, 1.442695
    %v968 = vpow.pop %v967
    %v969 = vsel %vm960, %v968, 0.0
    %v970 = vsel %vm962, %v969, 0.0
    %971 = vadd.xlane.f32.xlu0 %v970
    %v972 = vpop.xlane.xlu0 %971
    %v973 = vlog2.pop %v972
    %v974 = vmul.f32 %v973, 0.6931472
    %v975 = vsub.f32 %v966, %v974
    %v976 = vsel %vm960, %v975, 0.0
    %977 = vst [vmem:[#allocation12] sm:$0x3] %v976
    // Predicated region
    $region70: #{forward.1} parent=1 // pred_check
      _
    $region71: #{forward.1} parent=1 // pred_check_branch
      %979 = sbr.rel (0) target = $region73
    $region72: #{forward.1} parent=1 // pred_region
      %s981 = ssub.s32 32, 32
      %982 = vsyncadd [#allocation5], %s981
      %s984 = sshll.u32 [#allocation12], 4
      %s985 = int_to_ptr.vmem [resolvable:$true] %s984
      %987 = dma.vmem_to_hbm [thread:$0]  %s985, 32, %s12, [#allocation5]
    $region73: #{forward.1} parent=1 // pred_fallthru
      _
    // Predicated region
    $region74: #{forward.1} parent=1 // pred_check
      _
    $region75: #{forward.1} parent=1 // pred_check_branch
      %989 = sbr.rel (0) target = $region77
    $region76: #{forward.1} parent=1 // pred_region
      %990 = dma.done [#allocation5], 32
    $region77: #{forward.1} parent=1 // pred_fallthru
      _
    %991 = vsyncpa [#allocation4], 1
    %992 = vsyncpa [#allocation7], 1
    %993 = vsyncpa [#allocation10], 1
    %994 = vsyncpa [#allocation5], 1

</llo_original>
